<compile_context>
chip_gen: v7x
topology: tpu7x:2x2x1
jax: 0.10.0
libtpu: 0.0.40
codegen_flags: <defaults>
</compile_context>

<pallas_src>
import jax
import jax.numpy as jnp
from jax import lax
from jax.experimental import pallas as pl
from jax.experimental.pallas import tpu as pltpu


# Tile size along the 6000-wide hidden dimension (multiple of 128).
_HIDDEN_TILE = 512


def _mlp_kernel(x_ref, w1_ref, b1_ref, w2t_ref, b2_ref, w3t_ref, b3_ref,
                o_ref, acc_ref):
    k = pl.program_id(0)

    @pl.when(k == 0)
    def _init():
        acc_ref[...] = jnp.zeros_like(acc_ref)

    # fc1 chunk + relu: (B, 13) @ (13, TK) -> (B, TK)
    h1 = jnp.dot(x_ref[...], w1_ref[...], preferred_element_type=jnp.float32)
    h1 = jnp.maximum(h1 + b1_ref[...], 0.0)

    # Partial fc2: contract the hidden chunk against lane-dense w2t (50, TK).
    acc_ref[...] += lax.dot_general(
        h1, w2t_ref[...],
        dimension_numbers=(((1,), (1,)), ((), ())),
        preferred_element_type=jnp.float32,
    )

    @pl.when(k == pl.num_programs(0) - 1)
    def _finalize():
        h2 = jnp.maximum(acc_ref[...] + b2_ref[...], 0.0)          # (B, 50)
        # fc3 with lane-dense (1, 50) weights: multiply + lane reduce.
        logits = jnp.sum(h2 * w3t_ref[...], axis=1, keepdims=True) + b3_ref[...]
        # sigmoid: exp on EUP + reciprocal (no full-precision divide path).
        o_ref[...] = pl.reciprocal(1.0 + jnp.exp(-logits))


def net_forward(x, params):
    """x: (B, 13) f32.  params: w1 (13,6000), b1 (1,6000), w2t (50,6000),
    b2 (1,50), w3t (1,50), b3 (1,1)."""
    B = x.shape[0]
    w1, b1 = params["w1"], params["b1"]
    w2t, b2 = params["w2t"], params["b2"]
    w3t, b3 = params["w3t"], params["b3"]

    n_hidden = w1.shape[1]
    n_pad = pl.cdiv(n_hidden, _HIDDEN_TILE) * _HIDDEN_TILE
    pad = n_pad - n_hidden
    if pad:
        # Zero-padding the fc1 output dim is exact: padded h1 columns are
        # relu(0 + 0) = 0 and the matching zero columns of w2t contribute nothing.
        w1 = jnp.pad(w1, ((0, 0), (0, pad)))
        b1 = jnp.pad(b1, ((0, 0), (0, pad)))
        w2t = jnp.pad(w2t, ((0, 0), (0, pad)))

    n_tiles = n_pad // _HIDDEN_TILE
    d_in = w1.shape[0]
    d_mid = w2t.shape[0]

    return pl.pallas_call(
        _mlp_kernel,
        out_shape=jax.ShapeDtypeStruct((B, 1), jnp.float32),
        grid=(n_tiles,),
        in_specs=[
            pl.BlockSpec((B, d_in), lambda k: (0, 0)),              # x (resident)
            pl.BlockSpec((d_in, _HIDDEN_TILE), lambda k: (0, k)),   # w1 tile
            pl.BlockSpec((1, _HIDDEN_TILE), lambda k: (0, k)),      # b1 tile
            pl.BlockSpec((d_mid, _HIDDEN_TILE), lambda k: (0, k)),  # w2t tile
            pl.BlockSpec((1, d_mid), lambda k: (0, 0)),             # b2
            pl.BlockSpec((1, d_mid), lambda k: (0, 0)),             # w3t
            pl.BlockSpec((1, 1), lambda k: (0, 0)),                 # b3
        ],
        out_specs=pl.BlockSpec((B, 1), lambda k: (0, 0)),
        scratch_shapes=[pltpu.VMEM((B, d_mid), jnp.float32)],
        compiler_params=pltpu.CompilerParams(
            dimension_semantics=("arbitrary",),  # hidden-dim reduction axis
        ),
    )(x, w1, b1, w2t, b2, w3t, b3)


def init_params(key):
    """Deterministic init mimicking torch.nn.Linear default U(-1/sqrt(fan_in), +).
    Weights stored in kernel-friendly layouts (w2/w3 lane-dense, transposed)."""
    key, k1w, k1b, k2w, k2b, k3w, k3b = jax.random.split(key, 7)
    params = {}

    b = 1.0 / jnp.sqrt(jnp.float32(13))
    params["w1"] = jax.random.uniform(k1w, (13, 6000), jnp.float32, -b, b)
    params["b1"] = jax.random.uniform(k1b, (1, 6000), jnp.float32, -b, b)

    b = 1.0 / jnp.sqrt(jnp.float32(6000))
    params["w2t"] = jax.random.uniform(k2w, (50, 6000), jnp.float32, -b, b)  # (out, in)
    params["b2"] = jax.random.uniform(k2b, (1, 50), jnp.float32, -b, b)

    b = 1.0 / jnp.sqrt(jnp.float32(50))
    params["w3t"] = jax.random.uniform(k3w, (1, 50), jnp.float32, -b, b)     # (out, in)
    params["b3"] = jax.random.uniform(k3b, (1, 1), jnp.float32, -b, b)
    return params


if __name__ == "__main__":
    key = jax.random.PRNGKey(0)
    key, kx = jax.random.split(key)
    B = 8
    x = jax.random.normal(kx, (B, 13), jnp.float32)

    params = init_params(key)

    out = net_forward(x, params)
    out = jax.block_until_ready(out)

    # Reference check in plain JAX (same math as the PyTorch module).
    h1 = jnp.maximum(x @ params["w1"] + params["b1"], 0.0)
    h2 = jnp.maximum(h1 @ params["w2t"].T + params["b2"], 0.0)
    ref = jax.nn.sigmoid(h2 @ params["w3t"].T + params["b3"])
    assert out.shape == (B, 1)
    assert jnp.allclose(out, ref, atol=1e-4, rtol=1e-4)

    print("KERNEL_OK")
</pallas_src>

<mosaic_0001>
module attributes {stable_mosaic.version = 11 : i64} {
  func.func @_mlp_kernel(%arg0: i32, %arg1: memref<8x13xf32, #tpu.memory_space<vmem>>, %arg2: memref<13x512xf32, #tpu.memory_space<vmem>>, %arg3: memref<1x512xf32, #tpu.memory_space<vmem>>, %arg4: memref<50x512xf32, #tpu.memory_space<vmem>>, %arg5: memref<1x50xf32, #tpu.memory_space<vmem>>, %arg6: memref<1x50xf32, #tpu.memory_space<vmem>>, %arg7: memref<1x1xf32, #tpu.memory_space<vmem>>, %arg8: memref<8x1xf32, #tpu.memory_space<vmem>>, %arg9: memref<8x50xf32, #tpu.memory_space<vmem>>) attributes {dimension_semantics = [#tpu.dimension_semantics<arbitrary>], iteration_bounds = array<i64: 12>, scalar_prefetch = 0 : i64, scratch_operands = 1 : i64, tpu.core_type = #tpu.core_type<tc>, window_params = [{pipeline_mode = #tpu.pipeline_mode<synchronous>, transform_indices = @transform_0, window_bounds = array<i64: 8, 13>}, {transform_indices = @transform_1, window_bounds = array<i64: 13, 512>}, {transform_indices = @transform_2, window_bounds = array<i64: 1, 512>}, {transform_indices = @transform_3, window_bounds = array<i64: 50, 512>}, {pipeline_mode = #tpu.pipeline_mode<synchronous>, transform_indices = @transform_4, window_bounds = array<i64: 1, 50>}, {pipeline_mode = #tpu.pipeline_mode<synchronous>, transform_indices = @transform_5, window_bounds = array<i64: 1, 50>}, {pipeline_mode = #tpu.pipeline_mode<synchronous>, transform_indices = @transform_6, window_bounds = array<i64: 1, 1>}, {pipeline_mode = #tpu.pipeline_mode<synchronous>, transform_indices = @transform_7, window_bounds = array<i64: 8, 1>}]} {
    %c0_i32 = arith.constant 0 : i32
    %0 = arith.cmpi eq, %arg0, %c0_i32 : i32
    %1 = arith.extui %0 : i1 to i32
    %c0_i32_0 = arith.constant 0 : i32
    %2 = arith.cmpi ne, %1, %c0_i32_0 : i32
    scf.if %2 {
      %cst_15 = arith.constant 0.000000e+00 : f32
      %19 = vector.broadcast %cst_15 : f32 to vector<8x50xf32>
      %c0_16 = arith.constant 0 : index
      %c0_17 = arith.constant 0 : index
      %20 = vector.load %arg9[%c0_16, %c0_17] : memref<8x50xf32, #tpu.memory_space<vmem>>, vector<8x50xf32>
      tpu.vector_store %arg9[%c0_16, %c0_17], %19 {strides = array<i32>} : memref<8x50xf32, #tpu.memory_space<vmem>>, vector<8x50xf32>,
    } else {
    }
    %c0 = arith.constant 0 : index
    %c0_1 = arith.constant 0 : index
    %3 = vector.load %arg1[%c0, %c0_1] : memref<8x13xf32, #tpu.memory_space<vmem>>, vector<8x13xf32>
    %c0_2 = arith.constant 0 : index
    %c0_3 = arith.constant 0 : index
    %4 = vector.load %arg2[%c0_2, %c0_3] : memref<13x512xf32, #tpu.memory_space<vmem>>, vector<13x512xf32>
    %cst = arith.constant dense<0.000000e+00> : vector<8x512xf32>
    %5 = tpu.matmul %3, %4, %cst {dimension_numbers = #tpu.dot_dimension_numbers<[1], [0], [0], [1], [0, 0, 1, 1], [], []>} : vector<8x13xf32>, vector<13x512xf32>, vector<8x512xf32> -> vector<8x512xf32>
    %c0_4 = arith.constant 0 : index
    %c0_5 = arith.constant 0 : index
    %6 = vector.load %arg3[%c0_4, %c0_5] : memref<1x512xf32, #tpu.memory_space<vmem>>, vector<1x512xf32>
    %7 = vector.broadcast %6 : vector<1x512xf32> to vector<8x512xf32>
    %8 = arith.addf %5, %7 : vector<8x512xf32>
    %cst_6 = arith.constant 0.000000e+00 : f32
    %9 = vector.broadcast %cst_6 : f32 to vector<8x512xf32>
    %10 = arith.maximumf %8, %9 : vector<8x512xf32>
    %c0_7 = arith.constant 0 : index
    %c0_8 = arith.constant 0 : index
    %11 = vector.load %arg9[%c0_7, %c0_8] : memref<8x50xf32, #tpu.memory_space<vmem>>, vector<8x50xf32>
    %c0_9 = arith.constant 0 : index
    %c0_10 = arith.constant 0 : index
    %12 = vector.load %arg4[%c0_9, %c0_10] : memref<50x512xf32, #tpu.memory_space<vmem>>, vector<50x512xf32>
    %cst_11 = arith.constant dense<0.000000e+00> : vector<8x50xf32>
    %13 = tpu.matmul %10, %12, %cst_11 {dimension_numbers = #tpu.dot_dimension_numbers<[1], [1], [0], [0], [0, 0, 1, 0], [], []>} : vector<8x512xf32>, vector<50x512xf32>, vector<8x50xf32> -> vector<8x50xf32>
    %14 = arith.addf %11, %13 : vector<8x50xf32>
    %c0_12 = arith.constant 0 : index
    %c0_13 = arith.constant 0 : index
    %15 = vector.load %arg9[%c0_12, %c0_13] : memref<8x50xf32, #tpu.memory_space<vmem>>, vector<8x50xf32>
    tpu.vector_store %arg9[%c0_12, %c0_13], %14 {strides = array<i32>} : memref<8x50xf32, #tpu.memory_space<vmem>>, vector<8x50xf32>,
    %c11_i32 = arith.constant 11 : i32
    %16 = arith.cmpi eq, %arg0, %c11_i32 : i32
    %17 = arith.extui %16 : i1 to i32
    %c0_i32_14 = arith.constant 0 : i32
    %18 = arith.cmpi ne, %17, %c0_i32_14 : i32
    scf.if %18 {
      %c0_15 = arith.constant 0 : index
      %c0_16 = arith.constant 0 : index
      %19 = vector.load %arg9[%c0_15, %c0_16] : memref<8x50xf32, #tpu.memory_space<vmem>>, vector<8x50xf32>
      %c0_17 = arith.constant 0 : index
      %c0_18 = arith.constant 0 : index
      %20 = vector.load %arg5[%c0_17, %c0_18] : memref<1x50xf32, #tpu.memory_space<vmem>>, vector<1x50xf32>
      %21 = vector.broadcast %20 : vector<1x50xf32> to vector<8x50xf32>
      %22 = arith.addf %19, %21 : vector<8x50xf32>
      %cst_19 = arith.constant 0.000000e+00 : f32
      %23 = vector.broadcast %cst_19 : f32 to vector<8x50xf32>
      %24 = arith.maximumf %22, %23 : vector<8x50xf32>
      %c0_20 = arith.constant 0 : index
      %c0_21 = arith.constant 0 : index
      %25 = vector.load %arg6[%c0_20, %c0_21] : memref<1x50xf32, #tpu.memory_space<vmem>>, vector<1x50xf32>
      %26 = vector.broadcast %25 : vector<1x50xf32> to vector<8x50xf32>
      %27 = arith.mulf %24, %26 : vector<8x50xf32>
      %cst_22 = arith.constant dense<0.000000e+00> : vector<8xf32>
      %28 = vector.multi_reduction <add>, %27, %cst_22 [1] : vector<8x50xf32> to vector<8xf32>
      %29 = vector.shape_cast %28 : vector<8xf32> to vector<8x1xf32>
      %c0_23 = arith.constant 0 : index
      %c0_24 = arith.constant 0 : index
      %30 = vector.load %arg7[%c0_23, %c0_24] : memref<1x1xf32, #tpu.memory_space<vmem>>, vector<1x1xf32>
      %31 = vector.broadcast %30 : vector<1x1xf32> to vector<8x1xf32>
      %32 = arith.addf %29, %31 : vector<8x1xf32>
      %cst_25 = arith.constant 0.000000e+00 : f32
      %33 = vector.broadcast %cst_25 : f32 to vector<8x1xf32>
      %34 = arith.subf %33, %32 : vector<8x1xf32>
      %35 = math.exp %34 : vector<8x1xf32>
      %cst_26 = arith.constant 1.000000e+00 : f32
      %36 = vector.broadcast %cst_26 : f32 to vector<8x1xf32>
      %37 = arith.addf %36, %35 : vector<8x1xf32>
      %38 = tpu.reciprocal %37 : vector<8x1xf32> -> vector<8x1xf32>
      %c0_27 = arith.constant 0 : index
      %c0_28 = arith.constant 0 : index
      %39 = vector.load %arg8[%c0_27, %c0_28] : memref<8x1xf32, #tpu.memory_space<vmem>>, vector<8x1xf32>
      tpu.vector_store %arg8[%c0_27, %c0_28], %38 {strides = array<i32>} : memref<8x1xf32, #tpu.memory_space<vmem>>, vector<8x1xf32>,
    } else {
    }
    return
  }
  func.func @transform_0(%arg0: i32) -> (i32, i32) {
    %c0_i32 = arith.constant 0 : i32
    %c0_i32_0 = arith.constant 0 : i32
    %c0_i32_1 = arith.constant 0 : i32
    return %c0_i32, %c0_i32_0 : i32, i32
  }
  func.func @transform_1(%arg0: i32) -> (i32, i32) {
    %c0_i32 = arith.constant 0 : i32
    %c0_i32_0 = arith.constant 0 : i32
    return %c0_i32, %arg0 : i32, i32
  }
  func.func @transform_2(%arg0: i32) -> (i32, i32) {
    %c0_i32 = arith.constant 0 : i32
    %c0_i32_0 = arith.constant 0 : i32
    return %c0_i32, %arg0 : i32, i32
  }
  func.func @transform_3(%arg0: i32) -> (i32, i32) {
    %c0_i32 = arith.constant 0 : i32
    %c0_i32_0 = arith.constant 0 : i32
    return %c0_i32, %arg0 : i32, i32
  }
  func.func @transform_4(%arg0: i32) -> (i32, i32) {
    %c0_i32 = arith.constant 0 : i32
    %c0_i32_0 = arith.constant 0 : i32
    %c0_i32_1 = arith.constant 0 : i32
    return %c0_i32, %c0_i32_0 : i32, i32
  }
  func.func @transform_5(%arg0: i32) -> (i32, i32) {
    %c0_i32 = arith.constant 0 : i32
    %c0_i32_0 = arith.constant 0 : i32
    %c0_i32_1 = arith.constant 0 : i32
    return %c0_i32, %c0_i32_0 : i32, i32
  }
  func.func @transform_6(%arg0: i32) -> (i32, i32) {
    %c0_i32 = arith.constant 0 : i32
    %c0_i32_0 = arith.constant 0 : i32
    %c0_i32_1 = arith.constant 0 : i32
    return %c0_i32, %c0_i32_0 : i32, i32
  }
  func.func @transform_7(%arg0: i32) -> (i32, i32) {
    %c0_i32 = arith.constant 0 : i32
    %c0_i32_0 = arith.constant 0 : i32
    %c0_i32_1 = arith.constant 0 : i32
    return %c0_i32, %c0_i32_0 : i32, i32
  }
}

</mosaic_0001>

<llo_original>
// kernel: tpu_custom_call.1
$region0: #{tpu_custom_call.1}
  #allocation0 [shape = 'u32[]', space=smem, size = 0x4, offset = 0x4, fixed_abs, tag = 'smem constant byte address 0x4 - core index']
  #allocation1 [shape = 'u32[144,128]{1,0:T(1,128)}', space=vmem, size = 0x12000, scoped, tag = 'internal scratch']
  #allocation2 [shape = 'f32[8,50]{1,0:T(8,128)}', space=vmem, size = 0x1000, scoped, tag = 'scratch operand']
  #allocation3 [shape = 'f32[1,1]{1,0:T(1,128)S(1)}', space=vmem, size = 0x200, scoped, tag = 'scoped memory for tpu_custom_call.1']
  %s0 = inlined_call_operand.hbm [shape: f32[8,13], index: 0, kind: input, shape index: {}]
  %s1 = inlined_call_operand.hbm [shape: f32[13,6144], index: 1, kind: input, shape index: {}]
  %s2 = inlined_call_operand.hbm [shape: f32[1,6144], index: 2, kind: input, shape index: {}]
  %s3 = inlined_call_operand.hbm [shape: f32[50,6144], index: 3, kind: input, shape index: {}]
  %s4 = inlined_call_operand.hbm [shape: f32[1,50], index: 4, kind: input, shape index: {}]
  %s5 = inlined_call_operand.hbm [shape: f32[1,50], index: 5, kind: input, shape index: {}]
  %s6 = inlined_call_operand.<no memory space> [shape: f32[1,1], index: 6, kind: input, shape index: {}]
  %s7 = inlined_call_operand.vmem [shape: f32[8,1], index: 7, kind: output, shape index: {}]
  %s8 = sld [smem:[#allocation0]]
  $region93: #{tpu_custom_call.1} parent=0
    _
  %s10 = ssub.s32 1, %s8
  %s11 = scalar_select 0, %s10, %s8
  %v12 = vstv %s6
  %13 = vst [vmem:[#allocation3] sm:$0x1] %v12
  $region1: #{tpu_custom_call.1} parent=0
    #allocation4 [shape = 'u8[4096]{0}', space=vmem, size = 0x1000, scoped, tag = 'input window, operand 0, single buffered']
    #allocation5 [shape = 's32[2]{0}', space=sflag, size = 0x8, scoped, tag = 'scoped memory for tpu_custom_call.1']
    #allocation6 [shape = 'u8[65536]{0}', space=vmem, size = 0x10000, scoped, tag = 'input window, operand 1']
    #allocation7 [shape = 's32[2]{0}', space=sflag, size = 0x8, scoped, tag = 'scoped memory for tpu_custom_call.1']
    #allocation8 [shape = 'u8[4096]{0}', space=vmem, size = 0x1000, scoped, tag = 'input window, operand 2']
    #allocation9 [shape = 'u8[229376]{0}', space=vmem, size = 0x38000, scoped, tag = 'input window, operand 3']
    #allocation10 [shape = 's32[2]{0}', space=sflag, size = 0x8, scoped, tag = 'scoped memory for tpu_custom_call.1']
    #allocation11 [shape = 'u8[512]{0}', space=vmem, size = 0x400, scoped, tag = 'input window, operand 4, single buffered']
    #allocation12 [shape = 'u8[512]{0}', space=vmem, size = 0x400, scoped, tag = 'input window, operand 5, single buffered']
    #allocation13 [shape = 's32[1]{0}', space=sflag, size = 0x4, scoped, tag = 'scoped memory for tpu_custom_call.1']
    %14 = vsyncpa [#allocation5], 0
    %15 = vsyncpa [#allocation7], 0
    %s16 = scalar_lea.sflag [#allocation7], 1
    %17 = vsyncpa %s16, 0
    %18 = vsyncpa [#allocation10], 0
    %s19 = scalar_lea.sflag [#allocation10], 1
    %20 = vsyncpa %s19, 0
    %21 = vsyncpa [#allocation13], 0
    loop: start=0, step=1, limit=14
    $region2: #{tpu_custom_call.1} parent=1 // loop_pre_header
      _
    $region3: #{tpu_custom_call.1} parent=1 // loop_header
      %s23 = sphi 0, %s27
      %p24 = scmp.ge.s32.totalorder %s23, 14
      %s31 = sphi 0, %s31
      %s33 = sphi 0, %s31
      %s34 = sphi 0, %s33
      %s48 = sphi 0, %s34
      %s54 = sphi 0, %s56
      %s57 = sphi 0, %s54
      %s58 = sphi 0, %s57
      %s74 = sphi 0, %s58
      %s80 = sphi 0, %s82
      %s83 = sphi 0, %s80
      %s84 = sphi 0, %s83
      %s100 = sphi 0, %s84
      %s106 = sphi 0, %s108
      %s109 = sphi 0, %s106
      %s110 = sphi 0, %s109
      %s126 = sphi 0, %s110
      %s130 = sphi 0, %s130
      %s132 = sphi 0, %s130
      %s133 = sphi 0, %s132
      %s147 = sphi 0, %s133
      %s151 = sphi 0, %s151
      %s153 = sphi 0, %s151
      %s154 = sphi 0, %s153
      %s168 = sphi 0, %s154
      %s172 = sphi 0, %s172
      %s174 = sphi 0, %s172
      %s175 = sphi 0, %s174
      %s189 = sphi 0, %s175
      %s193 = sphi 0, %s193
      %s195 = sphi 0, %s193
      %s196 = sphi 0, %s195
      %s210 = sphi 0, %s196
    $region4: #{tpu_custom_call.1} parent=1 // loop_header_branch
      %26 = sbr.rel (%p24) target = $region8
    $region5: #{tpu_custom_call.1} parent=1 // loop_body
      %s28 = ssub.s32 %s23, 1
      %s29 = ssub.s32 %s23, 2
      %s30 = sadd.s32 %s23, 1
      %s32 = sadd.s32 %s31, 1
      %p35 = scmp.eq.s32.totalorder %s23, 11
      %p36 = scmp.ne.s32.totalorder %s31, %s33
      %p37 = scmp.eq.s32.totalorder %s23, 0
      %p38 = por %p36, %p37
      %p39 = scmp.ne.s32.totalorder %s31, %s33
      %p40 = scmp.eq.s32.totalorder %s28, 11
      %p41 = por %p39, %p40
      %p42 = scmp.ne.s32.totalorder %s33, %s34
      %p43 = scmp.eq.s32.totalorder %s28, 0
      %p44 = por %p42, %p43
      %p45 = scmp.ne.s32.totalorder %s33, %s34
      %p46 = scmp.eq.s32.totalorder %s29, 11
      %p47 = por %p45, %p46
      %p49 = scmp.ne.s32.totalorder %s34, %s48
      %p50 = scmp.eq.s32.totalorder %s29, 0
      %p51 = por %p49, %p50
      %s52 = ssub.s32 %s23, %s30
      %p53 = scmp.eq.s32.totalorder %s52, 0
      %s55 = sadd.s32 %s54, 1
      %s56 = scalar_select %p53, %s54, %s55
      %p59 = pneg %p53
      %p60 = scmp.eq.s32.totalorder %s23, 11
      %p61 = por %p59, %p60
      %p62 = scmp.ne.s32.totalorder %s54, %s57
      %p63 = scmp.eq.s32.totalorder %s23, 0
      %p64 = por %p62, %p63
      %p65 = scmp.ne.s32.totalorder %s54, %s57
      %p66 = scmp.eq.s32.totalorder %s28, 11
      %p67 = por %p65, %p66
      %p68 = scmp.ne.s32.totalorder %s57, %s58
      %p69 = scmp.eq.s32.totalorder %s28, 0
      %p70 = por %p68, %p69
      %p71 = scmp.ne.s32.totalorder %s57, %s58
      %p72 = scmp.eq.s32.totalorder %s29, 11
      %p73 = por %p71, %p72
      %p75 = scmp.ne.s32.totalorder %s58, %s74
      %p76 = scmp.eq.s32.totalorder %s29, 0
      %p77 = por %p75, %p76
      %s78 = ssub.s32 %s23, %s30
      %p79 = scmp.eq.s32.totalorder %s78, 0
      %s81 = sadd.s32 %s80, 1
      %s82 = scalar_select %p79, %s80, %s81
      %p85 = pneg %p79
      %p86 = scmp.eq.s32.totalorder %s23, 11
      %p87 = por %p85, %p86
      %p88 = scmp.ne.s32.totalorder %s80, %s83
      %p89 = scmp.eq.s32.totalorder %s23, 0
      %p90 = por %p88, %p89
      %p91 = scmp.ne.s32.totalorder %s80, %s83
      %p92 = scmp.eq.s32.totalorder %s28, 11
      %p93 = por %p91, %p92
      %p94 = scmp.ne.s32.totalorder %s83, %s84
      %p95 = scmp.eq.s32.totalorder %s28, 0
      %p96 = por %p94, %p95
      %p97 = scmp.ne.s32.totalorder %s83, %s84
      %p98 = scmp.eq.s32.totalorder %s29, 11
      %p99 = por %p97, %p98
      %p101 = scmp.ne.s32.totalorder %s84, %s100
      %p102 = scmp.eq.s32.totalorder %s29, 0
      %p103 = por %p101, %p102
      %s104 = ssub.s32 %s23, %s30
      %p105 = scmp.eq.s32.totalorder %s104, 0
      %s107 = sadd.s32 %s106, 1
      %s108 = scalar_select %p105, %s106, %s107
      %p111 = pneg %p105
      %p112 = scmp.eq.s32.totalorder %s23, 11
      %p113 = por %p111, %p112
      %p114 = scmp.ne.s32.totalorder %s106, %s109
      %p115 = scmp.eq.s32.totalorder %s23, 0
      %p116 = por %p114, %p115
      %p117 = scmp.ne.s32.totalorder %s106, %s109
      %p118 = scmp.eq.s32.totalorder %s28, 11
      %p119 = por %p117, %p118
      %p120 = scmp.ne.s32.totalorder %s109, %s110
      %p121 = scmp.eq.s32.totalorder %s28, 0
      %p122 = por %p120, %p121
      %p123 = scmp.ne.s32.totalorder %s109, %s110
      %p124 = scmp.eq.s32.totalorder %s29, 11
      %p125 = por %p123, %p124
      %p127 = scmp.ne.s32.totalorder %s110, %s126
      %p128 = scmp.eq.s32.totalorder %s29, 0
      %p129 = por %p127, %p128
      %s131 = sadd.s32 %s130, 1
      %p134 = scmp.eq.s32.totalorder %s23, 11
      %p135 = scmp.ne.s32.totalorder %s130, %s132
      %p136 = scmp.eq.s32.totalorder %s23, 0
      %p137 = por %p135, %p136
      %p138 = scmp.ne.s32.totalorder %s130, %s132
      %p139 = scmp.eq.s32.totalorder %s28, 11
      %p140 = por %p138, %p139
      %p141 = scmp.ne.s32.totalorder %s132, %s133
      %p142 = scmp.eq.s32.totalorder %s28, 0
      %p143 = por %p141, %p142
      %p144 = scmp.ne.s32.totalorder %s132, %s133
      %p145 = scmp.eq.s32.totalorder %s29, 11
      %p146 = por %p144, %p145
      %p148 = scmp.ne.s32.totalorder %s133, %s147
      %p149 = scmp.eq.s32.totalorder %s29, 0
      %p150 = por %p148, %p149
      %s152 = sadd.s32 %s151, 1
      %p155 = scmp.eq.s32.totalorder %s23, 11
      %p156 = scmp.ne.s32.totalorder %s151, %s153
      %p157 = scmp.eq.s32.totalorder %s23, 0
      %p158 = por %p156, %p157
      %p159 = scmp.ne.s32.totalorder %s151, %s153
      %p160 = scmp.eq.s32.totalorder %s28, 11
      %p161 = por %p159, %p160
      %p162 = scmp.ne.s32.totalorder %s153, %s154
      %p163 = scmp.eq.s32.totalorder %s28, 0
      %p164 = por %p162, %p163
      %p165 = scmp.ne.s32.totalorder %s153, %s154
      %p166 = scmp.eq.s32.totalorder %s29, 11
      %p167 = por %p165, %p166
      %p169 = scmp.ne.s32.totalorder %s154, %s168
      %p170 = scmp.eq.s32.totalorder %s29, 0
      %p171 = por %p169, %p170
      %s173 = sadd.s32 %s172, 1
      %p176 = scmp.eq.s32.totalorder %s23, 11
      %p177 = scmp.ne.s32.totalorder %s172, %s174
      %p178 = scmp.eq.s32.totalorder %s23, 0
      %p179 = por %p177, %p178
      %p180 = scmp.ne.s32.totalorder %s172, %s174
      %p181 = scmp.eq.s32.totalorder %s28, 11
      %p182 = por %p180, %p181
      %p183 = scmp.ne.s32.totalorder %s174, %s175
      %p184 = scmp.eq.s32.totalorder %s28, 0
      %p185 = por %p183, %p184
      %p186 = scmp.ne.s32.totalorder %s174, %s175
      %p187 = scmp.eq.s32.totalorder %s29, 11
      %p188 = por %p186, %p187
      %p190 = scmp.ne.s32.totalorder %s175, %s189
      %p191 = scmp.eq.s32.totalorder %s29, 0
      %p192 = por %p190, %p191
      %s194 = sadd.s32 %s193, 1
      %p197 = scmp.eq.s32.totalorder %s23, 11
      %p198 = scmp.ne.s32.totalorder %s193, %s195
      %p199 = scmp.eq.s32.totalorder %s23, 0
      %p200 = por %p198, %p199
      %p201 = scmp.ne.s32.totalorder %s193, %s195
      %p202 = scmp.eq.s32.totalorder %s28, 11
      %p203 = por %p201, %p202
      %p204 = scmp.ne.s32.totalorder %s195, %s196
      %p205 = scmp.eq.s32.totalorder %s28, 0
      %p206 = por %p204, %p205
      %p207 = scmp.ne.s32.totalorder %s195, %s196
      %p208 = scmp.eq.s32.totalorder %s29, 11
      %p209 = por %p207, %p208
      %p211 = scmp.ne.s32.totalorder %s196, %s210
      %p212 = scmp.eq.s32.totalorder %s29, 0
      %p213 = por %p211, %p212
      %p214 = scmp.le.s32.totalorder 1, %s23
      %p215 = scmp.lt.s32.totalorder %s23, 13
      %p216 = pnand %p214, %p215
      %p217 = pneg %p216
      // Predicated region
      $region9: #{tpu_custom_call.1} parent=5 // pred_check
        _
      $region10: #{tpu_custom_call.1} parent=5 // pred_check_branch
        %219 = sbr.rel (%p216) target = $region12
      $region11: #{tpu_custom_call.1} parent=5 // pred_region
        %s220 = ssub.s32 %s23, 1
        // Predicated region
        $region13: #{tpu_custom_call.1} parent=11 // pred_check
          %p221 = pneg %p44
        $region14: #{tpu_custom_call.1} parent=11 // pred_check_branch
          %223 = sbr.rel (%p221) target = $region16
        $region15: #{tpu_custom_call.1} parent=11 // pred_region
          %s225 = ssub.s32 128, 128
          %226 = vsyncadd [#allocation5], %s225
          %s228 = sshll.u32 [#allocation4], 4
          %s229 = int_to_ptr.vmem [resolvable:$true] %s228
          %231 = dma.hbm_to_vmem [thread:$0]  %s0, 128, %s229, [#allocation5]
        $region16: #{tpu_custom_call.1} parent=11 // pred_fallthru
          _
        // Predicated region
        $region17: #{tpu_custom_call.1} parent=11 // pred_check
          %p232 = pneg %p143
        $region18: #{tpu_custom_call.1} parent=11 // pred_check_branch
          %234 = sbr.rel (%p232) target = $region20
        $region19: #{tpu_custom_call.1} parent=11 // pred_region
          %s236 = ssub.s32 16, 16
          %237 = vsyncadd [#allocation10], %s236
          %s239 = sshll.u32 [#allocation11], 4
          %s240 = int_to_ptr.vmem [resolvable:$true] %s239
          %242 = dma.hbm_to_vmem [thread:$0]  %s4, 16, %s240, [#allocation10]
        $region20: #{tpu_custom_call.1} parent=11 // pred_fallthru
          _
        // Predicated region
        $region21: #{tpu_custom_call.1} parent=11 // pred_check
          %p243 = pneg %p164
        $region22: #{tpu_custom_call.1} parent=11 // pred_check_branch
          %245 = sbr.rel (%p243) target = $region24
        $region23: #{tpu_custom_call.1} parent=11 // pred_region
          %s247 = ssub.s32 16, 16
          %248 = vsyncadd [#allocation13], %s247
          %s250 = sshll.u32 [#allocation12], 4
          %s251 = int_to_ptr.vmem [resolvable:$true] %s250
          %253 = dma.hbm_to_vmem [thread:$0]  %s5, 16, %s251, [#allocation13]
        $region24: #{tpu_custom_call.1} parent=11 // pred_fallthru
          _
        // Predicated region
        $region25: #{tpu_custom_call.1} parent=11 // pred_check
          %p254 = pneg %p185
        $region26: #{tpu_custom_call.1} parent=11 // pred_check_branch
          %256 = sbr.rel (%p254) target = $region28
        $region27: #{tpu_custom_call.1} parent=11 // pred_region
          _
        $region28: #{tpu_custom_call.1} parent=11 // pred_fallthru
          _
      $region12: #{tpu_custom_call.1} parent=5 // pred_fallthru
        _
      %p257 = scmp.lt.s32.totalorder %s23, 12
      // Predicated region
      $region29: #{tpu_custom_call.1} parent=5 // pred_check
        %p258 = pneg %p257
      $region30: #{tpu_custom_call.1} parent=5 // pred_check_branch
        %260 = sbr.rel (%p258) target = $region32
      $region31: #{tpu_custom_call.1} parent=5 // pred_region
        // Predicated region
        $region33: #{tpu_custom_call.1} parent=31 // pred_check
          %p261 = pneg %p64
        $region34: #{tpu_custom_call.1} parent=31 // pred_check_branch
          %263 = sbr.rel (%p261) target = $region36
        $region35: #{tpu_custom_call.1} parent=31 // pred_region
          %s264 = sand.u32 %s23, 1
          %s265 = scalar_lea.sflag [#allocation7], %s264
          %s266 = sand.u32 %s54, 1
          %s267 = smul.addr %s266, 64
          %s268 = scalar_lea.vmem [#allocation6], %s267
          %s269 = smul.u32 4, %s23
          %s271 = ssub.s32 1024, 1024
          %272 = vsyncadd %s265, %s271
          %s273 = smul.addr %s269, 128
          %s274 = scalar_lea.hbm %s1, %s273
          %s275 = sshll.u32 %s268, 4
          %s276 = int_to_ptr.vmem [resolvable:$true] %s275
          %281 = dma.hbm_to_vmem [thread:$0]  %s274, 1024, %s276, %s265, 6144, 512, 32
        $region36: #{tpu_custom_call.1} parent=31 // pred_fallthru
          _
        // Predicated region
        $region37: #{tpu_custom_call.1} parent=31 // pred_check
          %p282 = pneg %p90
        $region38: #{tpu_custom_call.1} parent=31 // pred_check_branch
          %284 = sbr.rel (%p282) target = $region40
        $region39: #{tpu_custom_call.1} parent=31 // pred_region
          %s285 = sand.u32 %s23, 1
          %s286 = scalar_lea.sflag [#allocation7], %s285
          %s287 = sand.u32 %s80, 1
          %s288 = smul.addr %s287, 4
          %s289 = scalar_lea.vmem [#allocation8], %s288
          %s290 = smul.u32 4, %s23
          %s292 = ssub.s32 64, 64
          %293 = vsyncadd %s286, %s292
          %s294 = smul.addr %s290, 16
          %s295 = scalar_lea.hbm %s2, %s294
          %s297 = sshll.u32 %s289, 4
          %s298 = int_to_ptr.vmem [resolvable:$true] %s297
          %300 = dma.hbm_to_vmem [thread:$0]  %s295, 64, %s298, %s286
        $region40: #{tpu_custom_call.1} parent=31 // pred_fallthru
          _
        // Predicated region
        $region41: #{tpu_custom_call.1} parent=31 // pred_check
          %p301 = pneg %p116
        $region42: #{tpu_custom_call.1} parent=31 // pred_check_branch
          %303 = sbr.rel (%p301) target = $region44
        $region43: #{tpu_custom_call.1} parent=31 // pred_region
          %s304 = sand.u32 %s23, 1
          %s305 = scalar_lea.sflag [#allocation10], %s304
          %s306 = sand.u32 %s106, 1
          %s307 = smul.addr %s306, 224
          %s308 = scalar_lea.vmem [#allocation9], %s307
          %s309 = smul.u32 4, %s23
          %s311 = ssub.s32 3584, 3584
          %312 = vsyncadd %s305, %s311
          %s313 = smul.addr %s309, 128
          %s314 = scalar_lea.hbm %s3, %s313
          %s315 = sshll.u32 %s308, 4
          %s316 = int_to_ptr.vmem [resolvable:$true] %s315
          %321 = dma.hbm_to_vmem [thread:$0]  %s314, 3584, %s316, %s305, 6144, 512, 32
        $region44: #{tpu_custom_call.1} parent=31 // pred_fallthru
          _
      $region32: #{tpu_custom_call.1} parent=5 // pred_fallthru
        _
      %p322 = scmp.le.s32.totalorder 1, %s23
      %p323 = scmp.lt.s32.totalorder %s23, 13
      %p324 = pnand %p322, %p323
      %p325 = pneg %p324
      // Predicated region
      $region45: #{tpu_custom_call.1} parent=5 // pred_check
        _
      $region46: #{tpu_custom_call.1} parent=5 // pred_check_branch
        %327 = sbr.rel (%p324) target = $region48
      $region47: #{tpu_custom_call.1} parent=5 // pred_region
        %s328 = ssub.s32 %s23, 1
        // Predicated region
        $region49: #{tpu_custom_call.1} parent=47 // pred_check
          %p329 = pneg %p44
        $region50: #{tpu_custom_call.1} parent=47 // pred_check_branch
          %331 = sbr.rel (%p329) target = $region52
        $region51: #{tpu_custom_call.1} parent=47 // pred_region
          %332 = dma.done [#allocation5], 128
        $region52: #{tpu_custom_call.1} parent=47 // pred_fallthru
          _
        %s333 = sand.u32 %s28, 1
        %s334 = scalar_lea.sflag [#allocation7], %s333
        %s335 = sand.u32 %s57, 1
        %s336 = smul.addr %s335, 64
        %s337 = scalar_lea.vmem [#allocation6], %s336
        // Predicated region
        $region53: #{tpu_custom_call.1} parent=47 // pred_check
          %p338 = pneg %p70
        $region54: #{tpu_custom_call.1} parent=47 // pred_check_branch
          %340 = sbr.rel (%p338) target = $region56
        $region55: #{tpu_custom_call.1} parent=47 // pred_region
          %341 = dma.done %s334, 1024
        $region56: #{tpu_custom_call.1} parent=47 // pred_fallthru
          _
        %s342 = sand.u32 %s28, 1
        %s343 = scalar_lea.sflag [#allocation7], %s342
        %s344 = sand.u32 %s83, 1
        %s345 = smul.addr %s344, 4
        %s346 = scalar_lea.vmem [#allocation8], %s345
        // Predicated region
        $region57: #{tpu_custom_call.1} parent=47 // pred_check
          %p347 = pneg %p96
        $region58: #{tpu_custom_call.1} parent=47 // pred_check_branch
          %349 = sbr.rel (%p347) target = $region60
        $region59: #{tpu_custom_call.1} parent=47 // pred_region
          %350 = dma.done %s343, 64
        $region60: #{tpu_custom_call.1} parent=47 // pred_fallthru
          _
        %s351 = sand.u32 %s28, 1
        %s352 = scalar_lea.sflag [#allocation10], %s351
        %s353 = sand.u32 %s109, 1
        %s354 = smul.addr %s353, 224
        %s355 = scalar_lea.vmem [#allocation9], %s354
        // Predicated region
        $region61: #{tpu_custom_call.1} parent=47 // pred_check
          %p356 = pneg %p122
        $region62: #{tpu_custom_call.1} parent=47 // pred_check_branch
          %358 = sbr.rel (%p356) target = $region64
        $region63: #{tpu_custom_call.1} parent=47 // pred_region
          %359 = dma.done %s352, 3584
        $region64: #{tpu_custom_call.1} parent=47 // pred_fallthru
          _
        // Predicated region
        $region65: #{tpu_custom_call.1} parent=47 // pred_check
          %p360 = pneg %p143
        $region66: #{tpu_custom_call.1} parent=47 // pred_check_branch
          %362 = sbr.rel (%p360) target = $region68
        $region67: #{tpu_custom_call.1} parent=47 // pred_region
          %363 = dma.done [#allocation10], 16
        $region68: #{tpu_custom_call.1} parent=47 // pred_fallthru
          _
        // Predicated region
        $region69: #{tpu_custom_call.1} parent=47 // pred_check
          %p364 = pneg %p164
        $region70: #{tpu_custom_call.1} parent=47 // pred_check_branch
          %366 = sbr.rel (%p364) target = $region72
        $region71: #{tpu_custom_call.1} parent=47 // pred_region
          %367 = dma.done [#allocation13], 16
        $region72: #{tpu_custom_call.1} parent=47 // pred_fallthru
          _
        %p368 = pneg %p44
        %p369 = pneg %p41
        %s370 = sand.u32 %s28, 1
        %s371 = scalar_lea.sflag [#allocation7], %s370
        %s372 = sand.u32 %s57, 1
        %s373 = smul.addr %s372, 64
        %s374 = scalar_lea.vmem [#allocation6], %s373
        %p375 = pneg %p70
        %p376 = pneg %p67
        %s377 = sand.u32 %s28, 1
        %s378 = scalar_lea.sflag [#allocation7], %s377
        %s379 = sand.u32 %s83, 1
        %s380 = smul.addr %s379, 4
        %s381 = scalar_lea.vmem [#allocation8], %s380
        %p382 = pneg %p96
        %p383 = pneg %p93
        %s384 = sand.u32 %s28, 1
        %s385 = scalar_lea.sflag [#allocation10], %s384
        %s386 = sand.u32 %s109, 1
        %s387 = smul.addr %s386, 224
        %s388 = scalar_lea.vmem [#allocation9], %s387
        %p389 = pneg %p122
        %p390 = pneg %p119
        %p391 = pneg %p143
        %p392 = pneg %p140
        %p393 = pneg %p164
        %p394 = pneg %p161
        %p395 = pneg %p185
        %p396 = pneg %p182
        %p397 = pneg %p206
        %p398 = pneg %p203
        %s399 = smul.u32 4, %s28
        %s400 = smul.u32 4, %s28
        %s401 = smul.u32 4, %s28
        %p402 = scmp.eq.s32.totalorder %s28, 0
        // Predicated region
        $region73: #{tpu_custom_call.1} parent=47 // pred_check
          %p403 = pneg %p402
        $region74: #{tpu_custom_call.1} parent=47 // pred_check_branch
          %405 = sbr.rel (%p403) target = $region76
        $region75: #{tpu_custom_call.1} parent=47 // pred_region
          %vm406 = vcmask 408576
          %407 = vst.msk [vmem:[#allocation2] sm:$0xff] %vm406, 0.0
        $region76: #{tpu_custom_call.1} parent=47 // pred_fallthru
          _
        %v408 = vld [vmem:[#allocation4] sm:$0xff]
        %v409 = vld [vmem:[%s337] sm:$0xff]
        %v410 = vld [vmem:[%s337 + $0x8] sm:$0xff]
        %v411 = vld [vmem:[%s337 + $0x10] sm:$0xff]
        %v412 = vld [vmem:[%s337 + $0x18] sm:$0xff]
        %v413 = vld [vmem:[%s337 + $0x20] sm:$0x1f]
        %v414 = vld [vmem:[%s337 + $0x28] sm:$0x1f]
        %v415 = vld [vmem:[%s337 + $0x30] sm:$0x1f]
        %v416 = vld [vmem:[%s337 + $0x38] sm:$0x1f]
        %v417 = vld [vmem:[%s346] sm:$0xf]
        %v419 = vlaneseq
        %v420 = vshrl.u32 %v419, 7
        %v421 = vsub.s32 0, %v420
        %v422 = vrot.slane %v417, %v421
        %v423 = vlaneseq
        %v424 = vshrl.u32 %v423, 7
        %v425 = vsub.s32 1, %v424
        %v426 = vrot.slane %v417, %v425
        %v427 = vlaneseq
        %v428 = vshrl.u32 %v427, 7
        %v429 = vsub.s32 2, %v428
        %v430 = vrot.slane %v417, %v429
        %v431 = vlaneseq
        %v432 = vshrl.u32 %v431, 7
        %v433 = vsub.s32 3, %v432
        %v434 = vrot.slane %v417, %v433
        %vm439 = vcmask 105472
        %v441 = vsel %vm439, %v408, 0
        %vm443 = vcmask 1044480
        %v445 = vsel %vm443, %v413, 0
        %v448 = vsel %vm443, %v414, 0
        %v451 = vsel %vm443, %v415, 0
        %v454 = vsel %vm443, %v416, 0
        %456 = vmatprep.subr.mxu0 %v410
        %457 = vmatpush1.msra.mxu0 %v409
        %458 = vmatprep.subr.mxu0 %v448
        %459 = vmatpush1.msra.mxu0 %v445
        %460 = vmatprep.subr.mxu0 0.0
        %461 = vmatpush1.msra.mxu0 0.0
        %462 = vmatprep.subr.mxu0 0.0
        %463 = vmatpush1.msra.mxu0 0.0
        %464 = vmatprep.subr.mxu0 0.0
        %465 = vmatpush1.msra.mxu0 0.0
        %466 = vmatprep.subr.mxu0 0.0
        %467 = vmatpush1.msra.mxu0 0.0
        %468 = vmatprep.subr.mxu0 0.0
        %469 = vmatpush1.msra.mxu0 0.0
        %470 = vmatprep.subr.mxu0 0.0
        %471 = vmatpush1.msra.mxu0 0.0
        %472 = vmatprep.subr.mxu0 0.0
        %473 = vmatpush1.msra.mxu0 0.0
        %474 = vmatprep.subr.mxu0 0.0
        %475 = vmatpush1.msra.mxu0 0.0
        %476 = vmatprep.subr.mxu0 0.0
        %477 = vmatpush1.msra.mxu0 0.0
        %478 = vmatprep.subr.mxu0 0.0
        %479 = vmatpush1.msra.mxu0 0.0
        %480 = vmatprep.subr.mxu0 0.0
        %481 = vmatpush1.msra.mxu0 0.0
        %482 = vmatprep.subr.mxu0 0.0
        %483 = vmatpush1.msra.mxu0 0.0
        %484 = vmatprep.subr.mxu0 0.0
        %485 = vmatpush1.msra.mxu0 0.0
        %486 = vmatprep.subr.mxu0 0.0
        %487 = vmatpush1.msra.mxu0 0.0
        %488 = vmatprep.subr.mxu0 0.0
        %489 = vmatpush1.msra.mxu0 0.0
        %490 = vmatprep.subr.mxu0 0.0
        %491 = vmatpush1.msra.mxu0 0.0
        %492 = vmatprep.subr.mxu0 0.0
        %493 = vmatpush1.msra.mxu0 0.0
        %494 = vmatprep.subr.mxu0 0.0
        %495 = vmatpush1.msra.mxu0 0.0
        %496 = vmatprep.subr.mxu0 0.0
        %497 = vmatpush1.msra.mxu0 0.0
        %498 = vmatprep.subr.mxu0 0.0
        %499 = vmatpush1.msra.mxu0 0.0
        %500 = vmatprep.subr.mxu0 0.0
        %501 = vmatpush1.msra.mxu0 0.0
        %502 = vmatprep.subr.mxu0 0.0
        %503 = vmatpush1.msra.mxu0 0.0
        %504 = vmatprep.subr.mxu0 0.0
        %505 = vmatpush1.msra.mxu0 0.0
        %506 = vmatprep.subr.mxu0 0.0
        %507 = vmatpush1.msra.mxu0 0.0
        %508 = vmatprep.subr.mxu0 0.0
        %509 = vmatpush1.msra.mxu0 0.0
        %510 = vmatprep.subr.mxu0 0.0
        %511 = vmatpush1.msra.mxu0 0.0
        %512 = vmatprep.subr.mxu0 0.0
        %513 = vmatpush1.msra.mxu0 0.0
        %514 = vmatprep.subr.mxu0 0.0
        %515 = vmatpush1.msra.mxu0 0.0
        %516 = vmatprep.subr.mxu0 0.0
        %517 = vmatpush1.msra.mxu0 0.0
        %518 = vmatprep.subr.mxu0 0.0
        %519 = vmatpush1.msra.mxu0 0.0
        %520 = vmatprep.mubr.f32.mxu0 0.0
        %521 = vmatmul.mubr.f32.gmra.mrb[0].mxu0 %v441
        %v522 = vpop.f32.mrb[0].mxu0
        %v523 = vadd.f32 %v422, %v522
        %v524 = vpop.f32.mrb[0].mxu0
        %v525 = vadd.f32 %v426, %v524
        %526 = vdwg.mxu0
        %527 = vmatprep.subr.mxu0 %v412
        %528 = vmatpush1.msra.mxu0 %v411
        %529 = vmatprep.subr.mxu0 %v454
        %530 = vmatpush1.msra.mxu0 %v451
        %531 = vmatprep.subr.mxu0 0.0
        %532 = vmatpush1.msra.mxu0 0.0
        %533 = vmatprep.subr.mxu0 0.0
        %534 = vmatpush1.msra.mxu0 0.0
        %535 = vmatprep.subr.mxu0 0.0
        %536 = vmatpush1.msra.mxu0 0.0
        %537 = vmatprep.subr.mxu0 0.0
        %538 = vmatpush1.msra.mxu0 0.0
        %539 = vmatprep.subr.mxu0 0.0
        %540 = vmatpush1.msra.mxu0 0.0
        %541 = vmatprep.subr.mxu0 0.0
        %542 = vmatpush1.msra.mxu0 0.0
        %543 = vmatprep.subr.mxu0 0.0
        %544 = vmatpush1.msra.mxu0 0.0
        %545 = vmatprep.subr.mxu0 0.0
        %546 = vmatpush1.msra.mxu0 0.0
        %547 = vmatprep.subr.mxu0 0.0
        %548 = vmatpush1.msra.mxu0 0.0
        %549 = vmatprep.subr.mxu0 0.0
        %550 = vmatpush1.msra.mxu0 0.0
        %551 = vmatprep.subr.mxu0 0.0
        %552 = vmatpush1.msra.mxu0 0.0
        %553 = vmatprep.subr.mxu0 0.0
        %554 = vmatpush1.msra.mxu0 0.0
        %555 = vmatprep.subr.mxu0 0.0
        %556 = vmatpush1.msra.mxu0 0.0
        %557 = vmatprep.subr.mxu0 0.0
        %558 = vmatpush1.msra.mxu0 0.0
        %559 = vmatprep.subr.mxu0 0.0
        %560 = vmatpush1.msra.mxu0 0.0
        %561 = vmatprep.subr.mxu0 0.0
        %562 = vmatpush1.msra.mxu0 0.0
        %563 = vmatprep.subr.mxu0 0.0
        %564 = vmatpush1.msra.mxu0 0.0
        %565 = vmatprep.subr.mxu0 0.0
        %566 = vmatpush1.msra.mxu0 0.0
        %567 = vmatprep.subr.mxu0 0.0
        %568 = vmatpush1.msra.mxu0 0.0
        %569 = vmatprep.subr.mxu0 0.0
        %570 = vmatpush1.msra.mxu0 0.0
        %571 = vmatprep.subr.mxu0 0.0
        %572 = vmatpush1.msra.mxu0 0.0
        %573 = vmatprep.subr.mxu0 0.0
        %574 = vmatpush1.msra.mxu0 0.0
        %575 = vmatprep.subr.mxu0 0.0
        %576 = vmatpush1.msra.mxu0 0.0
        %577 = vmatprep.subr.mxu0 0.0
        %578 = vmatpush1.msra.mxu0 0.0
        %579 = vmatprep.subr.mxu0 0.0
        %580 = vmatpush1.msra.mxu0 0.0
        %581 = vmatprep.subr.mxu0 0.0
        %582 = vmatpush1.msra.mxu0 0.0
        %583 = vmatprep.subr.mxu0 0.0
        %584 = vmatpush1.msra.mxu0 0.0
        %585 = vmatprep.subr.mxu0 0.0
        %586 = vmatpush1.msra.mxu0 0.0
        %587 = vmatprep.subr.mxu0 0.0
        %588 = vmatpush1.msra.mxu0 0.0
        %589 = vmatprep.subr.mxu0 0.0
        %590 = vmatpush1.msra.mxu0 0.0
        %591 = vmatprep.mubr.f32.mxu0 0.0
        %592 = vmatmul.mubr.f32.gmra.mrb[0].mxu0 %v441
        %v593 = vpop.f32.mrb[0].mxu0
        %v594 = vadd.f32 %v430, %v593
        %v595 = vpop.f32.mrb[0].mxu0
        %v596 = vadd.f32 %v434, %v595
        %597 = vdwg.mxu0
        %v598 = vmax.f32 %v523, 0.0
        %v599 = vmax.f32 %v525, 0.0
        %v600 = vmax.f32 %v594, 0.0
        %v601 = vmax.f32 %v596, 0.0
        %v602 = vld [vmem:[#allocation2] sm:$0xff]
        %v603 = vld [vmem:[%s355] sm:$0xff]
        %v604 = vld [vmem:[%s355 + $0x8] sm:$0xff]
        %v605 = vld [vmem:[%s355 + $0x10] sm:$0xff]
        %v606 = vld [vmem:[%s355 + $0x18] sm:$0xff]
        %v607 = vld [vmem:[%s355 + $0x20] sm:$0xff]
        %v608 = vld [vmem:[%s355 + $0x28] sm:$0xff]
        %v609 = vld [vmem:[%s355 + $0x30] sm:$0xff]
        %v610 = vld [vmem:[%s355 + $0x38] sm:$0xff]
        %v611 = vld [vmem:[%s355 + $0x40] sm:$0xff]
        %v612 = vld [vmem:[%s355 + $0x48] sm:$0xff]
        %v613 = vld [vmem:[%s355 + $0x50] sm:$0xff]
        %v614 = vld [vmem:[%s355 + $0x58] sm:$0xff]
        %v615 = vld [vmem:[%s355 + $0x60] sm:$0xff]
        %v616 = vld [vmem:[%s355 + $0x68] sm:$0xff]
        %v617 = vld [vmem:[%s355 + $0x70] sm:$0xff]
        %v618 = vld [vmem:[%s355 + $0x78] sm:$0xff]
        %v619 = vld [vmem:[%s355 + $0x80] sm:$0xff]
        %v620 = vld [vmem:[%s355 + $0x88] sm:$0xff]
        %v621 = vld [vmem:[%s355 + $0x90] sm:$0xff]
        %v622 = vld [vmem:[%s355 + $0x98] sm:$0xff]
        %v623 = vld [vmem:[%s355 + $0xa0] sm:$0xff]
        %v624 = vld [vmem:[%s355 + $0xa8] sm:$0xff]
        %v625 = vld [vmem:[%s355 + $0xb0] sm:$0xff]
        %v626 = vld [vmem:[%s355 + $0xb8] sm:$0xff]
        %v627 = vld [vmem:[%s355 + $0xc0] sm:$0x3]
        %v628 = vld [vmem:[%s355 + $0xc8] sm:$0x3]
        %v629 = vld [vmem:[%s355 + $0xd0] sm:$0x3]
        %v630 = vld [vmem:[%s355 + $0xd8] sm:$0x3]
        %631 = vmatprep.subr.mxu0 %v604
        %632 = vmatpush1.xpose.msra.mxu0 %v603
        %633 = vmatprep.subr.mxu0 %v608
        %634 = vmatpush1.xpose.msra.mxu0 %v607
        %635 = vmatprep.subr.mxu0 %v612
        %636 = vmatpush1.xpose.msra.mxu0 %v611
        %637 = vmatprep.subr.mxu0 %v616
        %638 = vmatpush1.xpose.msra.mxu0 %v615
        %639 = vmatprep.subr.mxu0 %v620
        %640 = vmatpush1.xpose.msra.mxu0 %v619
        %641 = vmatprep.subr.mxu0 %v624
        %642 = vmatpush1.xpose.msra.mxu0 %v623
        %643 = vmatprep.subr.mxu0 %v628
        %644 = vmatpush1.xpose.msra.mxu0 %v627
        %645 = vmatprep.subr.mxu0 0.0
        %646 = vmatpush1.xpose.msra.mxu0 0.0
        %647 = vmatprep.subr.mxu0 0.0
        %648 = vmatpush1.xpose.msra.mxu0 0.0
        %649 = vmatprep.subr.mxu0 0.0
        %650 = vmatpush1.xpose.msra.mxu0 0.0
        %651 = vmatprep.subr.mxu0 0.0
        %652 = vmatpush1.xpose.msra.mxu0 0.0
        %653 = vmatprep.subr.mxu0 0.0
        %654 = vmatpush1.xpose.msra.mxu0 0.0
        %655 = vmatprep.subr.mxu0 0.0
        %656 = vmatpush1.xpose.msra.mxu0 0.0
        %657 = vmatprep.subr.mxu0 0.0
        %658 = vmatpush1.xpose.msra.mxu0 0.0
        %659 = vmatprep.subr.mxu0 0.0
        %660 = vmatpush1.xpose.msra.mxu0 0.0
        %661 = vmatprep.subr.mxu0 0.0
        %662 = vmatpush1.xpose.msra.mxu0 0.0
        %663 = vmatprep.subr.mxu0 0.0
        %664 = vmatpush1.xpose.msra.mxu0 0.0
        %665 = vmatprep.subr.mxu0 0.0
        %666 = vmatpush1.xpose.msra.mxu0 0.0
        %667 = vmatprep.subr.mxu0 0.0
        %668 = vmatpush1.xpose.msra.mxu0 0.0
        %669 = vmatprep.subr.mxu0 0.0
        %670 = vmatpush1.xpose.msra.mxu0 0.0
        %671 = vmatprep.subr.mxu0 0.0
        %672 = vmatpush1.xpose.msra.mxu0 0.0
        %673 = vmatprep.subr.mxu0 0.0
        %674 = vmatpush1.xpose.msra.mxu0 0.0
        %675 = vmatprep.subr.mxu0 0.0
        %676 = vmatpush1.xpose.msra.mxu0 0.0
        %677 = vmatprep.subr.mxu0 0.0
        %678 = vmatpush1.xpose.msra.mxu0 0.0
        %679 = vmatprep.subr.mxu0 0.0
        %680 = vmatpush1.xpose.msra.mxu0 0.0
        %681 = vmatprep.subr.mxu0 0.0
        %682 = vmatpush1.xpose.msra.mxu0 0.0
        %683 = vmatprep.subr.mxu0 0.0
        %684 = vmatpush1.xpose.msra.mxu0 0.0
        %685 = vmatprep.subr.mxu0 0.0
        %686 = vmatpush1.xpose.msra.mxu0 0.0
        %687 = vmatprep.subr.mxu0 0.0
        %688 = vmatpush1.xpose.msra.mxu0 0.0
        %689 = vmatprep.subr.mxu0 0.0
        %690 = vmatpush1.xpose.msra.mxu0 0.0
        %691 = vmatprep.subr.mxu0 0.0
        %692 = vmatpush1.xpose.msra.mxu0 0.0
        %693 = vmatprep.subr.mxu0 0.0
        %694 = vmatpush1.xpose.msra.mxu0 0.0
        %695 = vmatprep.mubr.f32.mxu0 %v599
        %696 = vmatmul.mubr.f32.gmra.mrb[0].mxu0 %v598
        %v697 = vpop.f32.mrb[0].mxu0
        %v698 = vadd.f32 0.0, %v697
        %v699 = vpop.f32.mrb[0].mxu0
        %700 = vdwg.mxu0
        %701 = vmatprep.subr.mxu0 %v606
        %702 = vmatpush1.xpose.msra.mxu0 %v605
        %703 = vmatprep.subr.mxu0 %v610
        %704 = vmatpush1.xpose.msra.mxu0 %v609
        %705 = vmatprep.subr.mxu0 %v614
        %706 = vmatpush1.xpose.msra.mxu0 %v613
        %707 = vmatprep.subr.mxu0 %v618
        %708 = vmatpush1.xpose.msra.mxu0 %v617
        %709 = vmatprep.subr.mxu0 %v622
        %710 = vmatpush1.xpose.msra.mxu0 %v621
        %711 = vmatprep.subr.mxu0 %v626
        %712 = vmatpush1.xpose.msra.mxu0 %v625
        %713 = vmatprep.subr.mxu0 %v630
        %714 = vmatpush1.xpose.msra.mxu0 %v629
        %715 = vmatprep.subr.mxu0 0.0
        %716 = vmatpush1.xpose.msra.mxu0 0.0
        %717 = vmatprep.subr.mxu0 0.0
        %718 = vmatpush1.xpose.msra.mxu0 0.0
        %719 = vmatprep.subr.mxu0 0.0
        %720 = vmatpush1.xpose.msra.mxu0 0.0
        %721 = vmatprep.subr.mxu0 0.0
        %722 = vmatpush1.xpose.msra.mxu0 0.0
        %723 = vmatprep.subr.mxu0 0.0
        %724 = vmatpush1.xpose.msra.mxu0 0.0
        %725 = vmatprep.subr.mxu0 0.0
        %726 = vmatpush1.xpose.msra.mxu0 0.0
        %727 = vmatprep.subr.mxu0 0.0
        %728 = vmatpush1.xpose.msra.mxu0 0.0
        %729 = vmatprep.subr.mxu0 0.0
        %730 = vmatpush1.xpose.msra.mxu0 0.0
        %731 = vmatprep.subr.mxu0 0.0
        %732 = vmatpush1.xpose.msra.mxu0 0.0
        %733 = vmatprep.subr.mxu0 0.0
        %734 = vmatpush1.xpose.msra.mxu0 0.0
        %735 = vmatprep.subr.mxu0 0.0
        %736 = vmatpush1.xpose.msra.mxu0 0.0
        %737 = vmatprep.subr.mxu0 0.0
        %738 = vmatpush1.xpose.msra.mxu0 0.0
        %739 = vmatprep.subr.mxu0 0.0
        %740 = vmatpush1.xpose.msra.mxu0 0.0
        %741 = vmatprep.subr.mxu0 0.0
        %742 = vmatpush1.xpose.msra.mxu0 0.0
        %743 = vmatprep.subr.mxu0 0.0
        %744 = vmatpush1.xpose.msra.mxu0 0.0
        %745 = vmatprep.subr.mxu0 0.0
        %746 = vmatpush1.xpose.msra.mxu0 0.0
        %747 = vmatprep.subr.mxu0 0.0
        %748 = vmatpush1.xpose.msra.mxu0 0.0
        %749 = vmatprep.subr.mxu0 0.0
        %750 = vmatpush1.xpose.msra.mxu0 0.0
        %751 = vmatprep.subr.mxu0 0.0
        %752 = vmatpush1.xpose.msra.mxu0 0.0
        %753 = vmatprep.subr.mxu0 0.0
        %754 = vmatpush1.xpose.msra.mxu0 0.0
        %755 = vmatprep.subr.mxu0 0.0
        %756 = vmatpush1.xpose.msra.mxu0 0.0
        %757 = vmatprep.subr.mxu0 0.0
        %758 = vmatpush1.xpose.msra.mxu0 0.0
        %759 = vmatprep.subr.mxu0 0.0
        %760 = vmatpush1.xpose.msra.mxu0 0.0
        %761 = vmatprep.subr.mxu0 0.0
        %762 = vmatpush1.xpose.msra.mxu0 0.0
        %763 = vmatprep.subr.mxu0 0.0
        %764 = vmatpush1.xpose.msra.mxu0 0.0
        %765 = vmatprep.mubr.f32.mxu0 %v601
        %766 = vmatmul.mubr.f32.gmra.mrb[0].mxu0 %v600
        %v767 = vpop.f32.mrb[0].mxu0
        %v768 = vadd.f32 %v698, %v767
        %v769 = vpop.f32.mrb[0].mxu0
        %770 = vdwg.mxu0
        %v771 = vadd.f32 %v602, %v768
        %vm772 = vcmask 408576
        %773 = vst.msk [vmem:[#allocation2] sm:$0xff] %vm772, %v771
        %p774 = scmp.eq.s32.totalorder %s28, 11
        // Predicated region
        $region77: #{tpu_custom_call.1} parent=47 // pred_check
          %p775 = pneg %p774
        $region78: #{tpu_custom_call.1} parent=47 // pred_check_branch
          %777 = sbr.rel (%p775) target = $region80
        $region79: #{tpu_custom_call.1} parent=47 // pred_region
          %v778 = vld [vmem:[#allocation2] sm:$0xff]
          %v779 = vld [vmem:[#allocation11] sm:$0x1]
          %v781 = vlaneseq
          %v782 = vshrl.u32 %v781, 7
          %v783 = vsub.s32 0, %v782
          %v784 = vrot.slane %v779, %v783
          %v786 = vadd.f32 %v778, %v784
          %v787 = vmax.f32 %v786, 0.0
          %v788 = vld [vmem:[#allocation12] sm:$0x1]
          %v790 = vlaneseq
          %v791 = vshrl.u32 %v790, 7
          %v792 = vsub.s32 0, %v791
          %v793 = vrot.slane %v788, %v792
          %v795 = vmul.f32 %v787, %v793
          %v796 = vsel %vm772, %v795, 0.0
          %797 = vadd.xlane.f32.xlu0 %v796
          %v798 = vpop.xlane.xlu0 %797
          %v799 = vld [vmem:[#allocation3] sm:$0x1]
          %v801 = vlaneseq
          %v802 = vshrl.u32 %v801, 7
          %v803 = vsub.s32 0, %v802
          %v804 = vrot.slane %v799, %v803
          %v806 = vadd.f32 %v798, %v804
          %v807 = vsub.f32 0.0, %v806
          %v808 = vmul.f32 %v807, 1.442695
          %v809 = vpow.pop %v808
          %v810 = vadd.f32 %v809, 1.0
          %v811 = vrcp.pop %v810
          %vm812 = vcmask 7168
          %813 = vst.msk [vmem:[%s7] sm:$0xff] %vm812, %v811
        $region80: #{tpu_custom_call.1} parent=47 // pred_fallthru
          _
        // Predicated region
        $region81: #{tpu_custom_call.1} parent=47 // pred_check
          %p814 = pneg %p203
        $region82: #{tpu_custom_call.1} parent=47 // pred_check_branch
          %816 = sbr.rel (%p814) target = $region84
        $region83: #{tpu_custom_call.1} parent=47 // pred_region
          _
        $region84: #{tpu_custom_call.1} parent=47 // pred_fallthru
          _
        // Predicated region
        $region85: #{tpu_custom_call.1} parent=47 // pred_check
          %p817 = pneg %p203
        $region86: #{tpu_custom_call.1} parent=47 // pred_check_branch
          %819 = sbr.rel (%p817) target = $region88
        $region87: #{tpu_custom_call.1} parent=47 // pred_region
          _
        $region88: #{tpu_custom_call.1} parent=47 // pred_fallthru
          _
      $region48: #{tpu_custom_call.1} parent=5 // pred_fallthru
        _
      %p820 = scmp.le.s32.totalorder 2, %s23
      // Predicated region
      $region89: #{tpu_custom_call.1} parent=5 // pred_check
        %p821 = pneg %p820
      $region90: #{tpu_custom_call.1} parent=5 // pred_check_branch
        %823 = sbr.rel (%p821) target = $region92
      $region91: #{tpu_custom_call.1} parent=5 // pred_region
        %s824 = ssub.s32 %s23, 2
      $region92: #{tpu_custom_call.1} parent=5 // pred_fallthru
        _
    $region6: #{tpu_custom_call.1} parent=1 // loop_footer
      %s27 = sadd.s32 1, %s23
    $region7: #{tpu_custom_call.1} parent=1 // loop_footer_branch
      %22 = sbr.rel target = $region3
    $region8: #{tpu_custom_call.1} parent=1 // loop_exit
      _
    %825 = vsyncpa [#allocation5], 1
    %s826 = scalar_lea.sflag [#allocation5], 1
    %827 = vsyncpa %s826, 1
    %828 = vsyncpa [#allocation7], 1
    %s829 = scalar_lea.sflag [#allocation7], 1
    %830 = vsyncpa %s829, 1
    %831 = vsyncpa [#allocation10], 1
    %s832 = scalar_lea.sflag [#allocation10], 1
    %833 = vsyncpa %s832, 1
    %834 = vsyncpa [#allocation13], 1

</llo_original>
